<compile_context>
chip_gen: v7x
topology: tpu7x:2x2x1
jax: 0.10.0
libtpu: 0.0.40
codegen_flags: <defaults>
</compile_context>

<pallas_src>
import dataclasses
import functools

import jax
import jax.numpy as jnp
from jax.experimental import pallas as pl
from jax.experimental.pallas import tpu as pltpu


def _round_up(x, m):
    return ((x + m - 1) // m) * m


def _encoder_kernel(x_ref, w_ref, b_ref, out_ref, *, d_pad):
    # x_ref:   [TILE_B, D_in]      activation tile (pipelined over the batch grid)
    # w_ref:   [D_in, 2*d_pad]     fused weight  [ w_mu | pad | w_k | pad ]
    # b_ref:   [1,    2*d_pad]     fused bias    [ b_mu | pad | b_k | pad ]
    # out_ref: [TILE_B, 2*d_pad]   lane-dense slab: mu half | kappa half
    y = jnp.dot(x_ref[...], w_ref[...], preferred_element_type=jnp.float32)
    y = y + b_ref[...]                      # broadcast bias add (VPU, under MXU/DMA slack)
    out_ref[:, :d_pad] = y[:, :d_pad]       # mu half, 128-aligned boundary
    out_ref[:, d_pad:] = jnp.exp(y[:, d_pad:])   # exp only on the kappa half (EUP)


def make_fused_encoder_params(w_mu, b_mu, w_k, b_k):
    """Build fused, lane-aligned weight/bias ONCE at parameter setup.

    Layout of the fused output axis (n_pad = 2 * round_up(D_out, 128)):
        lanes [0, D_out)                -> mu
        lanes [d_pad, d_pad + D_out)    -> kappa logits
    so both wrapper slices start at 128-aligned lane offsets.
    """
    d_in, d_out = w_mu.shape
    d_pad = _round_up(d_out, 128)
    n_pad = 2 * d_pad
    w = jnp.zeros((d_in, n_pad), jnp.float32)
    w = w.at[:, :d_out].set(w_mu.astype(jnp.float32))
    w = w.at[:, d_pad:d_pad + d_out].set(w_k.astype(jnp.float32))
    b = jnp.zeros((1, n_pad), jnp.float32)
    b = b.at[:, :d_out].set(jnp.reshape(b_mu, (1, d_out)).astype(jnp.float32))
    b = b.at[:, d_pad:d_pad + d_out].set(jnp.reshape(b_k, (1, d_out)).astype(jnp.float32))
    return w, b, d_out


def _choose_tile_b(batch, d_in, n_pad, *,
                   vmem_budget_bytes=24 * 1024 * 1024, max_tile=2048):
    """Pick the batch tile from a VMEM budget (safe on v5e/v6e/v7x).

    f32 accounting: x tile + out tile are double-buffered by the pipeline;
    the resident weight/bias are conservatively counted double-buffered too
    (their block index is constant, so they are fetched only once).
    """
    fixed = 2 * 4 * (d_in * n_pad + n_pad)     # weight + bias
    per_row = 2 * 4 * (d_in + n_pad)           # x tile + out tile, per batch row
    tb = max((vmem_budget_bytes - fixed) // per_row, 8)
    tb = (tb // 8) * 8                         # f32 sublane multiple
    tb = min(tb, max_tile)
    # Guarantee >= 2 grid steps whenever batch > 8 so the "parallel" batch
    # axis can actually be split across v7x's 2 TensorCores.
    tb = min(tb, max(8, _round_up(pl.cdiv(batch, 2), 8)))
    return int(max(tb, 8))


def clifford_torus_encoder_forward(x, w_fused, b_fused, output_dim, *, tile_b=None):
    """x: [B, D_in]; fused params from make_fused_encoder_params.

    Returns (mu, kappa), each [B, output_dim], with kappa = exp(x @ w_k + b_k).
    """
    batch, d_in = x.shape
    n_pad = w_fused.shape[-1]
    d_pad = n_pad // 2
    if tile_b is None:
        tile_b = _choose_tile_b(batch, d_in, n_pad)
    tile_b = max(8, _round_up(min(tile_b, _round_up(batch, 8)), 8))
    grid = (pl.cdiv(batch, tile_b),)           # ragged last block handled by Pallas

    out = pl.pallas_call(
        functools.partial(_encoder_kernel, d_pad=d_pad),
        out_shape=jax.ShapeDtypeStruct((batch, n_pad), jnp.float32),
        grid=grid,
        in_specs=[
            pl.BlockSpec((tile_b, d_in), lambda i: (i, 0)),   # x tile, pipelined
            pl.BlockSpec((d_in, n_pad), lambda i: (0, 0)),    # fused weight, resident
            pl.BlockSpec((1, n_pad), lambda i: (0, 0)),       # fused bias, resident
        ],
        out_specs=pl.BlockSpec((tile_b, n_pad), lambda i: (i, 0)),
        compiler_params=pltpu.CompilerParams(
            dimension_semantics=("parallel",),                # megacore-friendly (v7x)
            vmem_limit_bytes=32 * 1024 * 1024,                # budgeted tiles fit with headroom
        ),
        cost_estimate=pl.CostEstimate(
            flops=2 * batch * d_in * n_pad,
            transcendentals=batch * d_pad,
            bytes_accessed=4 * (batch * d_in + d_in * n_pad + n_pad + batch * n_pad),
        ),
    )(x.astype(jnp.float32), w_fused, b_fused)

    mu = out[:, :output_dim]                   # starts at lane 0
    kappa = out[:, d_pad:d_pad + output_dim]   # starts at a 128-aligned lane offset
    return mu, kappa


@dataclasses.dataclass
class CliffordTorusDistributionParams:
    """Stand-in for CliffordTorusDistribution: holds loc / concentration.

    orig_dim = output_dim, event_shape = 2 * orig_dim (as in the PyTorch class).
    """
    loc: jax.Array
    concentration: jax.Array

    @property
    def orig_dim(self):
        return self.loc.shape[-1]

    @property
    def event_shape(self):
        return (2 * self.orig_dim,)

    # TODO(synk): rsample/log_prob/entropy need complex FFTs, von Mises sampling
    # and Bessel functions (i0/i1); they are not part of the encoder forward hot
    # path and have no clean Pallas equivalent here.


if __name__ == "__main__":
    key = jax.random.PRNGKey(0)
    kx, kp = jax.random.split(key)

    batch = 8
    input_dim = 32
    output_dim = 16

    x = jax.random.normal(kx, (batch, input_dim), jnp.float32)

    # nn.Linear-style init: U(-1/sqrt(in), 1/sqrt(in)).
    bound = 1.0 / (input_dim ** 0.5)
    k1, k2, k3, k4 = jax.random.split(kp, 4)
    w_mu = jax.random.uniform(k1, (input_dim, output_dim), jnp.float32, -bound, bound)
    b_mu = jax.random.uniform(k2, (output_dim,), jnp.float32, -bound, bound)
    w_k = jax.random.uniform(k3, (input_dim, output_dim), jnp.float32, -bound, bound)
    b_k = jax.random.uniform(k4, (output_dim,), jnp.float32, -bound, bound)

    # Hoisted out of the forward: built once at parameter setup.
    w_fused, b_fused, d_out = make_fused_encoder_params(w_mu, b_mu, w_k, b_k)

    mu, kappa = clifford_torus_encoder_forward(x, w_fused, b_fused, d_out)
    jax.block_until_ready((mu, kappa))

    # Reference check in plain JAX.
    mu_ref = x @ w_mu + b_mu
    kappa_ref = jnp.exp(x @ w_k + b_k)
    assert mu.shape == (batch, output_dim) and kappa.shape == (batch, output_dim)
    assert jnp.allclose(mu, mu_ref, atol=1e-5, rtol=1e-5)
    assert jnp.allclose(kappa, kappa_ref, atol=1e-5, rtol=1e-5)

    dist = CliffordTorusDistributionParams(loc=mu, concentration=kappa)
    assert dist.orig_dim == output_dim
    assert dist.event_shape == (2 * output_dim,)
    assert bool(jnp.all(dist.concentration > 0))

    print("KERNEL_OK")
</pallas_src>

<mosaic_0001>
module attributes {stable_mosaic.version = 11 : i64} {
  func.func @_encoder_kernel(%arg0: i32, %arg1: memref<8x32xf32, #tpu.memory_space<vmem>>, %arg2: memref<32x256xf32, #tpu.memory_space<vmem>>, %arg3: memref<1x256xf32, #tpu.memory_space<vmem>>, %arg4: memref<8x256xf32, #tpu.memory_space<vmem>>) attributes {dimension_semantics = [#tpu.dimension_semantics<parallel>], iteration_bounds = array<i64: 1>, scalar_prefetch = 0 : i64, scratch_operands = 0 : i64, tpu.core_type = #tpu.core_type<tc>, window_params = [{transform_indices = @transform_0, window_bounds = array<i64: 8, 32>}, {pipeline_mode = #tpu.pipeline_mode<synchronous>, transform_indices = @transform_1, window_bounds = array<i64: 32, 256>}, {pipeline_mode = #tpu.pipeline_mode<synchronous>, transform_indices = @transform_2, window_bounds = array<i64: 1, 256>}, {transform_indices = @transform_3, window_bounds = array<i64: 8, 256>}]} {
    %c0 = arith.constant 0 : index
    %c0_0 = arith.constant 0 : index
    %0 = vector.load %arg1[%c0, %c0_0] : memref<8x32xf32, #tpu.memory_space<vmem>>, vector<8x32xf32>
    %c0_1 = arith.constant 0 : index
    %c0_2 = arith.constant 0 : index
    %1 = vector.load %arg2[%c0_1, %c0_2] : memref<32x256xf32, #tpu.memory_space<vmem>>, vector<32x256xf32>
    %cst = arith.constant dense<0.000000e+00> : vector<8x256xf32>
    %2 = tpu.matmul %0, %1, %cst {dimension_numbers = #tpu.dot_dimension_numbers<[1], [0], [0], [1], [0, 0, 1, 1], [], []>} : vector<8x32xf32>, vector<32x256xf32>, vector<8x256xf32> -> vector<8x256xf32>
    %c0_3 = arith.constant 0 : index
    %c0_4 = arith.constant 0 : index
    %3 = vector.load %arg3[%c0_3, %c0_4] : memref<1x256xf32, #tpu.memory_space<vmem>>, vector<1x256xf32>
    %4 = vector.broadcast %3 : vector<1x256xf32> to vector<8x256xf32>
    %5 = arith.addf %2, %4 : vector<8x256xf32>
    %6 = vector.extract_strided_slice %5 {offsets = [0, 0], sizes = [8, 128], strides = [1, 1]} : vector<8x256xf32> to vector<8x128xf32>
    %c0_5 = arith.constant 0 : index
    %c0_6 = arith.constant 0 : index
    %7 = vector.load %arg4[%c0_5, %c0_6] : memref<8x256xf32, #tpu.memory_space<vmem>>, vector<8x128xf32>
    tpu.vector_store %arg4[%c0_5, %c0_6], %6 {strides = array<i32>} : memref<8x256xf32, #tpu.memory_space<vmem>>, vector<8x128xf32>,
    %8 = vector.extract_strided_slice %5 {offsets = [0, 128], sizes = [8, 128], strides = [1, 1]} : vector<8x256xf32> to vector<8x128xf32>
    %9 = math.exp %8 : vector<8x128xf32>
    %c0_7 = arith.constant 0 : index
    %c128 = arith.constant 128 : index
    %10 = vector.load %arg4[%c0_7, %c128] : memref<8x256xf32, #tpu.memory_space<vmem>>, vector<8x128xf32>
    tpu.vector_store %arg4[%c0_7, %c128], %9 {strides = array<i32>} : memref<8x256xf32, #tpu.memory_space<vmem>>, vector<8x128xf32>,
    return
  }
  func.func @transform_0(%arg0: i32) -> (i32, i32) {
    %c0_i32 = arith.constant 0 : i32
    %c0_i32_0 = arith.constant 0 : i32
    return %arg0, %c0_i32 : i32, i32
  }
  func.func @transform_1(%arg0: i32) -> (i32, i32) {
    %c0_i32 = arith.constant 0 : i32
    %c0_i32_0 = arith.constant 0 : i32
    %c0_i32_1 = arith.constant 0 : i32
    return %c0_i32, %c0_i32_0 : i32, i32
  }
  func.func @transform_2(%arg0: i32) -> (i32, i32) {
    %c0_i32 = arith.constant 0 : i32
    %c0_i32_0 = arith.constant 0 : i32
    %c0_i32_1 = arith.constant 0 : i32
    return %c0_i32, %c0_i32_0 : i32, i32
  }
  func.func @transform_3(%arg0: i32) -> (i32, i32) {
    %c0_i32 = arith.constant 0 : i32
    %c0_i32_0 = arith.constant 0 : i32
    return %arg0, %c0_i32 : i32, i32
  }
}

</mosaic_0001>

<llo_original>
// kernel: tpu_custom_call.1
$region0: #{tpu_custom_call.1}
  #allocation0 [shape = 'u32[]', space=smem, size = 0x4, offset = 0x4, fixed_abs, tag = 'smem constant byte address 0x4 - core index']
  #allocation1 [shape = 'u32[144,128]{1,0:T(1,128)}', space=vmem, size = 0x12000, scoped, tag = 'internal scratch']
  %s0 = inlined_call_operand.hbm [shape: f32[8,32], index: 0, kind: input, shape index: {}]
  %s1 = inlined_call_operand.hbm [shape: f32[32,256], index: 1, kind: input, shape index: {}]
  %s2 = inlined_call_operand.vmem [shape: f32[1,256], index: 2, kind: input, shape index: {}]
  %s3 = inlined_call_operand.hbm [shape: f32[8,256], index: 3, kind: output, shape index: {}]
  %s4 = sld [smem:[#allocation0]]
  $region30: #{tpu_custom_call.1} parent=0
    _
  %s6 = ssub.s32 1, %s4
  %s7 = scalar_select 0, %s6, %s4
  $region1: #{tpu_custom_call.1} parent=0
    #allocation2 [shape = 'u8[4096]{0}', space=vmem, size = 0x1000, scoped, tag = 'input window, operand 0, single buffered']
    #allocation3 [shape = 's32[1]{0}', space=sflag, size = 0x4, scoped, tag = 'scoped memory for tpu_custom_call.1']
    #allocation4 [shape = 's32[1]{0}', space=sflag, size = 0x4, scoped, tag = 'scoped memory for tpu_custom_call.1']
    #allocation5 [shape = 'u8[32768]{0}', space=vmem, size = 0x8000, scoped, tag = 'input window, operand 1, single buffered']
    #allocation6 [shape = 's32[1]{0}', space=sflag, size = 0x4, scoped, tag = 'scoped memory for tpu_custom_call.1']
    #allocation7 [shape = 'u8[8192]{0}', space=vmem, size = 0x2000, scoped, tag = 'output window, operand 0, single buffered']
    %8 = vsyncpa [#allocation3], 0
    %9 = vsyncpa [#allocation6], 0
    %10 = vsyncpa [#allocation4], 0
    // Predicated region
    $region2: #{tpu_custom_call.1} parent=1 // pred_check
      _
    $region3: #{tpu_custom_call.1} parent=1 // pred_check_branch
      %12 = sbr.rel (0) target = $region5
    $region4: #{tpu_custom_call.1} parent=1 // pred_region
      %s14 = ssub.s32 128, 128
      %15 = vsyncadd [#allocation3], %s14
      %s17 = sshll.u32 [#allocation2], 4
      %s18 = int_to_ptr.vmem [resolvable:$true] %s17
      %20 = dma.hbm_to_vmem [thread:$0]  %s0, 128, %s18, [#allocation3]
    $region5: #{tpu_custom_call.1} parent=1 // pred_fallthru
      _
    // Predicated region
    $region6: #{tpu_custom_call.1} parent=1 // pred_check
      _
    $region7: #{tpu_custom_call.1} parent=1 // pred_check_branch
      %22 = sbr.rel (0) target = $region9
    $region8: #{tpu_custom_call.1} parent=1 // pred_region
      %s24 = ssub.s32 1024, 1024
      %25 = vsyncadd [#allocation6], %s24
      %s26 = sshll.u32 [#allocation5], 4
      %s27 = int_to_ptr.vmem [resolvable:$true] %s26
      %32 = dma.hbm_to_vmem [thread:$0]  %s1, 1024, %s27, [#allocation6], 256, 256, 16
    $region9: #{tpu_custom_call.1} parent=1 // pred_fallthru
      _
    // Predicated region
    $region10: #{tpu_custom_call.1} parent=1 // pred_check
      _
    $region11: #{tpu_custom_call.1} parent=1 // pred_check_branch
      %34 = sbr.rel (0) target = $region13
    $region12: #{tpu_custom_call.1} parent=1 // pred_region
      _
    $region13: #{tpu_custom_call.1} parent=1 // pred_fallthru
      _
    // Predicated region
    $region14: #{tpu_custom_call.1} parent=1 // pred_check
      _
    $region15: #{tpu_custom_call.1} parent=1 // pred_check_branch
      %36 = sbr.rel (0) target = $region17
    $region16: #{tpu_custom_call.1} parent=1 // pred_region
      %37 = dma.done [#allocation3], 128
    $region17: #{tpu_custom_call.1} parent=1 // pred_fallthru
      _
    // Predicated region
    $region18: #{tpu_custom_call.1} parent=1 // pred_check
      _
    $region19: #{tpu_custom_call.1} parent=1 // pred_check_branch
      %39 = sbr.rel (0) target = $region21
    $region20: #{tpu_custom_call.1} parent=1 // pred_region
      %40 = dma.done [#allocation6], 1024
    $region21: #{tpu_custom_call.1} parent=1 // pred_fallthru
      _
    %v41 = vld [vmem:[#allocation2] sm:$0xff]
    %v42 = vld [vmem:[#allocation5] sm:$0xff]
    %v43 = vld [vmem:[#allocation5 + $0x8] sm:$0xff]
    %v44 = vld [vmem:[#allocation5 + $0x10] sm:$0xff]
    %v45 = vld [vmem:[#allocation5 + $0x18] sm:$0xff]
    %v46 = vld [vmem:[#allocation5 + $0x20] sm:$0xff]
    %v47 = vld [vmem:[#allocation5 + $0x28] sm:$0xff]
    %v48 = vld [vmem:[#allocation5 + $0x30] sm:$0xff]
    %v49 = vld [vmem:[#allocation5 + $0x38] sm:$0xff]
    %v50 = vld [vmem:[%s2] sm:$0x3]
    %v52 = vlaneseq
    %v53 = vshrl.u32 %v52, 7
    %v54 = vsub.s32 0, %v53
    %v55 = vrot.slane %v50, %v54
    %v56 = vlaneseq
    %v57 = vshrl.u32 %v56, 7
    %v58 = vsub.s32 1, %v57
    %v59 = vrot.slane %v50, %v58
    %vm62 = vcmask 261120
    %v64 = vsel %vm62, %v41, 0
    %66 = vmatprep.subr.mxu0 %v43
    %67 = vmatpush1.msra.mxu0 %v42
    %68 = vmatprep.subr.mxu0 %v45
    %69 = vmatpush1.msra.mxu0 %v44
    %70 = vmatprep.subr.mxu0 %v47
    %71 = vmatpush1.msra.mxu0 %v46
    %72 = vmatprep.subr.mxu0 %v49
    %73 = vmatpush1.msra.mxu0 %v48
    %74 = vmatprep.subr.mxu0 0.0
    %75 = vmatpush1.msra.mxu0 0.0
    %76 = vmatprep.subr.mxu0 0.0
    %77 = vmatpush1.msra.mxu0 0.0
    %78 = vmatprep.subr.mxu0 0.0
    %79 = vmatpush1.msra.mxu0 0.0
    %80 = vmatprep.subr.mxu0 0.0
    %81 = vmatpush1.msra.mxu0 0.0
    %82 = vmatprep.subr.mxu0 0.0
    %83 = vmatpush1.msra.mxu0 0.0
    %84 = vmatprep.subr.mxu0 0.0
    %85 = vmatpush1.msra.mxu0 0.0
    %86 = vmatprep.subr.mxu0 0.0
    %87 = vmatpush1.msra.mxu0 0.0
    %88 = vmatprep.subr.mxu0 0.0
    %89 = vmatpush1.msra.mxu0 0.0
    %90 = vmatprep.subr.mxu0 0.0
    %91 = vmatpush1.msra.mxu0 0.0
    %92 = vmatprep.subr.mxu0 0.0
    %93 = vmatpush1.msra.mxu0 0.0
    %94 = vmatprep.subr.mxu0 0.0
    %95 = vmatpush1.msra.mxu0 0.0
    %96 = vmatprep.subr.mxu0 0.0
    %97 = vmatpush1.msra.mxu0 0.0
    %98 = vmatprep.subr.mxu0 0.0
    %99 = vmatpush1.msra.mxu0 0.0
    %100 = vmatprep.subr.mxu0 0.0
    %101 = vmatpush1.msra.mxu0 0.0
    %102 = vmatprep.subr.mxu0 0.0
    %103 = vmatpush1.msra.mxu0 0.0
    %104 = vmatprep.subr.mxu0 0.0
    %105 = vmatpush1.msra.mxu0 0.0
    %106 = vmatprep.subr.mxu0 0.0
    %107 = vmatpush1.msra.mxu0 0.0
    %108 = vmatprep.subr.mxu0 0.0
    %109 = vmatpush1.msra.mxu0 0.0
    %110 = vmatprep.subr.mxu0 0.0
    %111 = vmatpush1.msra.mxu0 0.0
    %112 = vmatprep.subr.mxu0 0.0
    %113 = vmatpush1.msra.mxu0 0.0
    %114 = vmatprep.subr.mxu0 0.0
    %115 = vmatpush1.msra.mxu0 0.0
    %116 = vmatprep.subr.mxu0 0.0
    %117 = vmatpush1.msra.mxu0 0.0
    %118 = vmatprep.subr.mxu0 0.0
    %119 = vmatpush1.msra.mxu0 0.0
    %120 = vmatprep.subr.mxu0 0.0
    %121 = vmatpush1.msra.mxu0 0.0
    %122 = vmatprep.subr.mxu0 0.0
    %123 = vmatpush1.msra.mxu0 0.0
    %124 = vmatprep.subr.mxu0 0.0
    %125 = vmatpush1.msra.mxu0 0.0
    %126 = vmatprep.subr.mxu0 0.0
    %127 = vmatpush1.msra.mxu0 0.0
    %128 = vmatprep.subr.mxu0 0.0
    %129 = vmatpush1.msra.mxu0 0.0
    %130 = vmatprep.mubr.f32.mxu0 0.0
    %131 = vmatmul.mubr.f32.gmra.mrb[0].mxu0 %v64
    %v132 = vpop.f32.mrb[0].mxu0
    %v133 = vadd.f32 %v55, %v132
    %v134 = vpop.f32.mrb[0].mxu0
    %v135 = vadd.f32 %v59, %v134
    %136 = vdwg.mxu0
    %137 = vst [vmem:[#allocation7] sm:$0xff] %v133
    %v138 = vmul.f32 %v135, 1.442695
    %v139 = vpow.pop %v138
    %140 = vst [vmem:[#allocation7 + $0x8] sm:$0xff] %v139
    // Predicated region
    $region22: #{tpu_custom_call.1} parent=1 // pred_check
      _
    $region23: #{tpu_custom_call.1} parent=1 // pred_check_branch
      %142 = sbr.rel (0) target = $region25
    $region24: #{tpu_custom_call.1} parent=1 // pred_region
      %s144 = ssub.s32 256, 256
      %145 = vsyncadd [#allocation4], %s144
      %s147 = sshll.u32 [#allocation7], 4
      %s148 = int_to_ptr.vmem [resolvable:$true] %s147
      %150 = dma.vmem_to_hbm [thread:$0]  %s148, 256, %s3, [#allocation4]
    $region25: #{tpu_custom_call.1} parent=1 // pred_fallthru
      _
    // Predicated region
    $region26: #{tpu_custom_call.1} parent=1 // pred_check
      _
    $region27: #{tpu_custom_call.1} parent=1 // pred_check_branch
      %152 = sbr.rel (0) target = $region29
    $region28: #{tpu_custom_call.1} parent=1 // pred_region
      %153 = dma.done [#allocation4], 256
    $region29: #{tpu_custom_call.1} parent=1 // pred_fallthru
      _
    %154 = vsyncpa [#allocation3], 1
    %155 = vsyncpa [#allocation6], 1
    %156 = vsyncpa [#allocation4], 1

</llo_original>
